<compile_context>
chip_gen: v5e
topology: v5e:2x2
jax: 0.10.0
libtpu: 0.0.40
codegen_flags: <defaults>
</compile_context>

<pallas_src>
import functools

import jax
import jax.numpy as jnp
from jax.experimental import pallas as pl
from jax.experimental.pallas import tpu as pltpu


# ---------------------------------------------------------------------------
# Kernel
# ---------------------------------------------------------------------------
def _dorefa_kernel(x_ref, o_ref, *, n, inv_n):
    # Upcast to f32 so rounding near .5 boundaries matches the f32 reference
    # even for low-precision activation dtypes, then cast back.
    x = x_ref[...].astype(jnp.float32)
    xc = jnp.clip(x, 0.0, 1.0)
    o_ref[...] = (jnp.round(xc * n) * inv_n).astype(o_ref.dtype)


# ---------------------------------------------------------------------------
# Wrapper
# ---------------------------------------------------------------------------
_VMEM_BUDGET_BYTES = 36 << 20   # in/out double buffers + f32 temporaries
_VMEM_LIMIT_BYTES = 48 << 20    # < v7x 64 MiB physical; plenty on v5e/v6e
_MIN_SPLIT_BYTES = 4 << 20      # force >=4 grid steps above this size
_MIN_GRID_STEPS = 4             # >= 2 * num_tensorcores (v7x megacore)


def _ceil_div(a, b):
    return -(-a // b)


def _quantize_jnp(x, n, inv_n):
    xf = x.astype(jnp.float32)
    return (jnp.round(jnp.clip(xf, 0.0, 1.0) * n) * inv_n).astype(x.dtype)


def dorefa_input_forward(activation, num_bits, *, alias_input=False):
    """DoReFa activation quantization. Same shape/dtype as input.

    alias_input=True adds input_output_aliases={0: 0}; only useful when the
    caller donates the activation buffer at the jit boundary (halves peak HBM
    footprint, no bandwidth change).
    """
    if num_bits == 32:
        # Passthrough — free, no kernel launch / HBM traffic.
        return activation

    orig_shape = activation.shape
    dtype = activation.dtype
    total = activation.size
    if total == 0:
        return activation
    itemsize = jnp.dtype(dtype).itemsize

    n = float(2.0 ** num_bits - 1)
    inv_n = 1.0 / n

    flat = activation.reshape(-1)
    tail_len = total % 128
    main_len = total - tail_len

    main_out = None
    if main_len:
        # Widest lane-dense column count that divides the aligned prefix.
        cols = 128
        for c in (1024, 512, 256):
            if main_len % c == 0:
                cols = c
                break
        rows = main_len // cols

        # Dtype-aware sublane alignment (f32: 8, bf16/f16: 16, int8/fp8: 32).
        row_align = {4: 8, 2: 16, 1: 32}.get(itemsize, 8)

        # VMEM per row of block: double-buffered in + out in native dtype plus
        # ~2 full-block f32 temporaries from the upcast/clip/round chain.
        bytes_per_row = cols * (4 * itemsize + 2 * 4)
        budget_rows = max(
            row_align,
            (_VMEM_BUDGET_BYTES // bytes_per_row) // row_align * row_align,
        )

        # Keep >= _MIN_GRID_STEPS "parallel" steps for big tensors so v7x's two
        # TensorCores get work and DMA overlaps compute on all generations.
        if main_len * itemsize >= _MIN_SPLIT_BYTES:
            step_rows = _ceil_div(rows, _MIN_GRID_STEPS)
        else:
            step_rows = rows
        step_rows = _ceil_div(step_rows, row_align) * row_align

        block_rows = min(budget_rows, step_rows)
        if block_rows >= rows:
            block_rows = rows           # full-extent rows is always legal
        grid = (_ceil_div(rows, block_rows),)

        x_main = flat if tail_len == 0 else flat[:main_len]
        x2d = x_main.reshape(rows, cols)

        kernel = functools.partial(_dorefa_kernel, n=n, inv_n=inv_n)
        out2d = pl.pallas_call(
            kernel,
            out_shape=jax.ShapeDtypeStruct((rows, cols), dtype),
            grid_spec=pltpu.PrefetchScalarGridSpec(
                num_scalar_prefetch=0,
                grid=grid,
                in_specs=[pl.BlockSpec((block_rows, cols), lambda i: (i, 0))],
                out_specs=pl.BlockSpec((block_rows, cols), lambda i: (i, 0)),
            ),
            compiler_params=pltpu.CompilerParams(
                dimension_semantics=("parallel",),
                vmem_limit_bytes=_VMEM_LIMIT_BYTES),
            cost_estimate=pl.CostEstimate(
                flops=3 * main_len,
                transcendentals=0,
                bytes_accessed=2 * main_len * itemsize),
            input_output_aliases=({0: 0} if alias_input else {}),
        )(x2d)
        main_out = out2d.reshape(-1)

    if tail_len:
        # Rare path: < 128 trailing elements quantized in plain jnp; one
        # concatenate instead of full-tensor pad + slice round trips.
        tail_out = _quantize_jnp(flat[main_len:], n, inv_n)
        out_flat = tail_out if main_out is None else jnp.concatenate(
            [main_out, tail_out])
    else:
        out_flat = main_out

    return out_flat.reshape(orig_shape)


def dorefa_input_ref(activation, num_bits):
    if num_bits == 32:
        return activation
    n = float(2.0 ** num_bits - 1)
    q = jnp.round(jnp.clip(activation.astype(jnp.float32), 0.0, 1.0) * n) / n
    return q.astype(activation.dtype)


if __name__ == "__main__":
    key = jax.random.PRNGKey(0)
    # NCHW activations, values outside [0,1] to exercise the clamp.
    x = jax.random.uniform(key, (2, 4, 16, 16), dtype=jnp.float32,
                           minval=-0.5, maxval=1.5)

    num_bits = 4
    out = jax.block_until_ready(dorefa_input_forward(x, num_bits))
    ref = dorefa_input_ref(x, num_bits)
    assert out.shape == x.shape and out.dtype == x.dtype
    assert jnp.allclose(out, ref, atol=1e-6), "mismatch vs reference"

    # Odd element count exercises the aligned-prefix + jnp-tail path.
    key2 = jax.random.PRNGKey(1)
    y = jax.random.uniform(key2, (3, 5, 7, 11), dtype=jnp.float32,
                           minval=-0.5, maxval=1.5)
    outy = jax.block_until_ready(dorefa_input_forward(y, 2))
    refy = dorefa_input_ref(y, 2)
    assert outy.shape == y.shape and outy.dtype == y.dtype
    assert jnp.allclose(outy, refy, atol=1e-6), "mismatch vs reference (tail path)"

    # bf16 input: kernel upcasts to f32 internally, casts back.
    xb = x.astype(jnp.bfloat16)
    outb = jax.block_until_ready(dorefa_input_forward(xb, 2))
    refb = dorefa_input_ref(xb, 2)
    assert outb.shape == xb.shape and outb.dtype == xb.dtype
    assert jnp.allclose(outb.astype(jnp.float32), refb.astype(jnp.float32),
                        atol=1e-2), "mismatch vs reference (bf16 path)"

    # num_bits == 32 passthrough is a pure identity in the wrapper.
    out32 = jax.block_until_ready(dorefa_input_forward(x, 32))
    assert jnp.allclose(out32, x), "identity path mismatch"

    print("KERNEL_OK")
</pallas_src>

<mosaic_0001>
module attributes {stable_mosaic.version = 11 : i64} {
  func.func @_dorefa_kernel(%arg0: i32, %arg1: memref<2x1024xf32, #tpu.memory_space<vmem>>, %arg2: memref<2x1024xf32, #tpu.memory_space<vmem>>) attributes {dimension_semantics = [#tpu.dimension_semantics<parallel>], iteration_bounds = array<i64: 1>, scalar_prefetch = 0 : i64, scratch_operands = 0 : i64, tpu.core_type = #tpu.core_type<tc>, window_params = [{transform_indices = @transform_0, window_bounds = array<i64: 2, 1024>}, {transform_indices = @transform_1, window_bounds = array<i64: 2, 1024>}]} {
    %c0 = arith.constant 0 : index
    %c0_0 = arith.constant 0 : index
    %0 = vector.load %arg1[%c0, %c0_0] : memref<2x1024xf32, #tpu.memory_space<vmem>>, vector<2x1024xf32>
    %cst = arith.constant 0.000000e+00 : f32
    %cst_1 = arith.constant 1.000000e+00 : f32
    %1 = vector.broadcast %cst : f32 to vector<2x1024xf32>
    %2 = arith.maximumf %1, %0 : vector<2x1024xf32>
    %3 = vector.broadcast %cst_1 : f32 to vector<2x1024xf32>
    %4 = arith.minimumf %3, %2 : vector<2x1024xf32>
    %cst_2 = arith.constant 1.500000e+01 : f32
    %5 = vector.broadcast %cst_2 : f32 to vector<2x1024xf32>
    %6 = arith.mulf %4, %5 : vector<2x1024xf32>
    %7 = math.roundeven %6 : vector<2x1024xf32>
    %cst_3 = arith.constant 0.0666666701 : f32
    %8 = vector.broadcast %cst_3 : f32 to vector<2x1024xf32>
    %9 = arith.mulf %7, %8 : vector<2x1024xf32>
    %c0_4 = arith.constant 0 : index
    %c0_5 = arith.constant 0 : index
    %10 = vector.load %arg2[%c0_4, %c0_5] : memref<2x1024xf32, #tpu.memory_space<vmem>>, vector<2x1024xf32>
    tpu.vector_store %arg2[%c0_4, %c0_5], %9 {strides = array<i32>} : memref<2x1024xf32, #tpu.memory_space<vmem>>, vector<2x1024xf32>,
    return
  }
  func.func @transform_0(%arg0: i32) -> (i32, i32) {
    %c0_i32 = arith.constant 0 : i32
    %c0_i32_0 = arith.constant 0 : i32
    return %arg0, %c0_i32 : i32, i32
  }
  func.func @transform_1(%arg0: i32) -> (i32, i32) {
    %c0_i32 = arith.constant 0 : i32
    %c0_i32_0 = arith.constant 0 : i32
    return %arg0, %c0_i32 : i32, i32
  }
}

</mosaic_0001>

<llo_original>
// kernel: tpu_custom_call.1
$region0: #{tpu_custom_call.1}
  #allocation0 [shape = 'u32[]', space=smem, size = 0x4, offset = 0x4, fixed_abs, tag = 'smem constant byte address 0x4 - core index']
  #allocation1 [shape = 'u32[72,128]{1,0:T(1,128)}', space=vmem, size = 0x9000, scoped, tag = 'internal scratch']
  %s0 = inlined_call_operand.hbm [shape: f32[2,1024], index: 0, kind: input, shape index: {}]
  %s1 = inlined_call_operand.hbm [shape: f32[2,1024], index: 1, kind: output, shape index: {}]
  %s2 = sld [smem:[#allocation0]]
  $region18: #{tpu_custom_call.1} parent=0
    _
  %s4 = ssub.s32 1, %s2
  %s5 = scalar_select 0, %s4, %s2
  $region1: #{tpu_custom_call.1} parent=0
    #allocation2 [shape = 'u8[8192]{0}', space=vmem, size = 0x2000, scoped, tag = 'input window, operand 0, single buffered']
    #allocation3 [shape = 's32[1]{0}', space=sflag, size = 0x4, scoped, tag = 'scoped memory for tpu_custom_call.1']
    #allocation4 [shape = 's32[1]{0}', space=sflag, size = 0x4, scoped, tag = 'scoped memory for tpu_custom_call.1']
    #allocation5 [shape = 'u8[8192]{0}', space=vmem, size = 0x2000, scoped, tag = 'output window, operand 0, single buffered']
    %6 = vsyncpa [#allocation3], 0
    %7 = vsyncpa [#allocation4], 0
    // Predicated region
    $region2: #{tpu_custom_call.1} parent=1 // pred_check
      _
    $region3: #{tpu_custom_call.1} parent=1 // pred_check_branch
      %9 = sbr.rel (0) target = $region5
    $region4: #{tpu_custom_call.1} parent=1 // pred_region
      %11 = vsyncadd [#allocation3], 0
      %s13 = sshll.u32 %s0, 4
      %s14 = int_to_ptr.hbm [resolvable:$true] %s13
      %s15 = sshll.u32 [#allocation2], 4
      %s16 = int_to_ptr.vmem [resolvable:$true] %s15
      %18 = dma.hbm_to_vmem [thread:$0]  %s14, 256, %s16, [#allocation3]
    $region5: #{tpu_custom_call.1} parent=1 // pred_fallthru
      _
    // Predicated region
    $region6: #{tpu_custom_call.1} parent=1 // pred_check
      _
    $region7: #{tpu_custom_call.1} parent=1 // pred_check_branch
      %20 = sbr.rel (0) target = $region9
    $region8: #{tpu_custom_call.1} parent=1 // pred_region
      %22 = dma.done [#allocation3], 256
    $region9: #{tpu_custom_call.1} parent=1 // pred_fallthru
      _
    %v23 = vld [vmem:[#allocation2] sm:$0xff]
    %v24 = vld [vmem:[#allocation2 + $0x8] sm:$0xff]
    %v25 = vmax.f32 %v23, 0.0
    %v26 = vmax.f32 %v24, 0.0
    %v27 = vmin.f32 %v25, 1.0
    %v28 = vmin.f32 %v26, 1.0
    %v29 = vmul.f32 %v27, 15.0
    %v30 = vmul.f32 %v28, 15.0
    %v31 = vround.ne.pseudo %v29
    %v32 = vround.ne.pseudo %v30
    %v33 = vmul.f32 %v31, 0.06666667
    %v34 = vmul.f32 %v32, 0.06666667
    %35 = vst [vmem:[#allocation5] sm:$0xff] %v33
    %36 = vst [vmem:[#allocation5 + $0x8] sm:$0xff] %v34
    // Predicated region
    $region10: #{tpu_custom_call.1} parent=1 // pred_check
      _
    $region11: #{tpu_custom_call.1} parent=1 // pred_check_branch
      %38 = sbr.rel (0) target = $region13
    $region12: #{tpu_custom_call.1} parent=1 // pred_region
      %40 = vsyncadd [#allocation4], 0
      %s42 = sshll.u32 [#allocation5], 4
      %s43 = int_to_ptr.vmem [resolvable:$true] %s42
      %s44 = sshll.u32 %s1, 4
      %s45 = int_to_ptr.hbm [resolvable:$true] %s44
      %47 = dma.vmem_to_hbm [thread:$0]  %s43, 256, %s45, [#allocation4]
    $region13: #{tpu_custom_call.1} parent=1 // pred_fallthru
      _
    // Predicated region
    $region14: #{tpu_custom_call.1} parent=1 // pred_check
      _
    $region15: #{tpu_custom_call.1} parent=1 // pred_check_branch
      %49 = sbr.rel (0) target = $region17
    $region16: #{tpu_custom_call.1} parent=1 // pred_region
      %51 = dma.done [#allocation4], 256
    $region17: #{tpu_custom_call.1} parent=1 // pred_fallthru
      _
    %52 = vsyncpa [#allocation3], 1
    %53 = vsyncpa [#allocation4], 1

</llo_original>
